<compile_context>
chip_gen: v7x
topology: tpu7x:2x2x1
jax: 0.10.0
libtpu: 0.0.40
codegen_flags: <defaults>
</compile_context>

<pallas_src>
import functools
import math

import jax
import jax.numpy as jnp
from jax.experimental import pallas as pl
from jax.experimental.pallas import tpu as pltpu

FIXED_STDDEV = 0.4
_SCALE = math.exp(FIXED_STDDEV)        # Normal(mu, exp(y_sigma)) with y_sigma = 0.4

_MAX_TILE_ROWS = 4096                  # 4096 * 128 * 4 B = 2 MiB per f32 buffer


def _mu_kernel(inp_ref, w1_ref, b1_ref, w2_ref, b2_ref, mu_ref, *, reps):
    """Single-row MLP: mu = ReLU(ReLU(inp @ W1 + b1) @ W2 + b2).

    Every batch row of the PyTorch module is an identical copy of self.input,
    so mu is computed from one (1, H0) row and emitted as a lane-dense
    (1, 128) row: the (1, P) mu row tiled `reps` = 128 // P times, matching
    the row-major flattening of the (B, P) output slab.
    """
    h = jnp.dot(inp_ref[...], w1_ref[...],
                preferred_element_type=jnp.float32) + b1_ref[...]
    h = jnp.maximum(h, 0.0)
    o = jnp.dot(h, w2_ref[...],
                preferred_element_type=jnp.float32) + b2_ref[...]
    o = jnp.maximum(o, 0.0)                               # (1, P) mu row
    mu_ref[...] = jnp.tile(o, (1, reps))                  # (1, 128)


def _sample_kernel(mu_ref, eps_ref, out_ref):
    """One (tile_rows, 128) slab of samples: mu + exp(0.4) * eps.

    mu_ref is a (1, 128) row that stays VMEM-resident across the grid
    (constant block index) and is broadcast implicitly in the FMA — no
    tile-sized temporary.  eps streams in as bf16 and is upcast in the FMA.
    """
    out_ref[...] = mu_ref[...] + _SCALE * eps_ref[...].astype(jnp.float32)


def _pick_tile_rows(rows):
    """Row-tile of the (rows, 128) output slab.

    * cap at 4096 rows: 2 MiB f32 out + 1 MiB bf16 eps, double-buffered
      (~6 MiB) — comfortably under the 32 MiB scoped-VMEM default on every
      generation (including v7x's 64 MiB physical VMEM);
    * once there is enough data, use >= 2 grid steps so the "parallel" axis
      actually shards across v7x's two TensorCores.
    """
    if rows > _MAX_TILE_ROWS:
        return _MAX_TILE_ROWS
    if rows >= 1024:
        half = (rows + 1) // 2
        return min(((half + 7) // 8) * 8, _MAX_TILE_ROWS)   # multiple of 8
    return rows          # tile == full array dim -> no (8,128) constraint


def _draw_eps(key, rows):
    # bf16 eps halves the HBM read bytes of the noise stream; FMA stays f32.
    return jax.random.normal(key, (rows, 128), dtype=jnp.bfloat16)


def _compute_mu_row(params, reps):
    inp, w1, b1, w2, b2 = params
    return pl.pallas_call(
        functools.partial(_mu_kernel, reps=reps),
        out_shape=jax.ShapeDtypeStruct((1, 128), jnp.float32),
    )(inp, w1, b1, w2, b2)


def generative_mlp_forward(params, batch_size, output_shape, *, key=None,
                           use_mean=False):
    """params = (input(1,H0), W1(H0,H1), b1(1,H1), W2(H1,P), b2(1,P))."""
    inp, w1, b1, w2, b2 = params
    P = w2.shape[1]
    assert P == int(math.prod(output_shape))
    # Lane-dense layout: flatten (B, P) row-major into (rows, 128).
    assert 128 % P == 0, "this layout needs prod(output_shape) to divide 128"
    total = batch_size * P
    assert total % 128 == 0, "need batch_size * prod(output_shape) % 128 == 0"
    rows = total // 128
    reps = 128 // P

    mu_row = _compute_mu_row(params, reps)               # (1, 128) lane-dense

    if use_mean:
        # Mean path: Normal(mu, .).mean == mu.  A plain XLA broadcast-store
        # runs at full HBM bandwidth; no streaming kernel needed.
        mu = mu_row[:, :P]                               # (1, P)
        out = jnp.broadcast_to(mu, (batch_size, P))
        return out.reshape((batch_size,) + tuple(output_shape))

    if key is None:
        key = jax.random.PRNGKey(0)
    eps = _draw_eps(key, rows)                           # (rows, 128) bf16

    tile_rows = _pick_tile_rows(rows)
    grid_rows = pl.cdiv(rows, tile_rows)

    out = pl.pallas_call(
        _sample_kernel,
        out_shape=jax.ShapeDtypeStruct((rows, 128), jnp.float32),
        grid=(grid_rows,),
        in_specs=[
            # mu row: constant block index -> stays VMEM-resident across grid.
            pl.BlockSpec((1, 128), lambda i: (0, 0)),
            # eps stream: one row-tile per grid step (double-buffered).
            pl.BlockSpec((tile_rows, 128), lambda i: (i, 0)),
        ],
        out_specs=pl.BlockSpec((tile_rows, 128), lambda i: (i, 0)),
        compiler_params=pltpu.CompilerParams(
            dimension_semantics=("parallel",)),
    )(mu_row, eps)

    return out.reshape((batch_size,) + tuple(output_shape))


def init_params(key, hidden_sizes, output_shape):
    """Deterministic synthetic init matching the PyTorch module's parameter shapes."""
    prod_out = int(math.prod(output_shape))      # fixed_stddev truthy -> no 2x
    sizes = list(hidden_sizes) + [prod_out]
    keys = jax.random.split(key, 1 + 2 * (len(sizes) - 1))
    # self.input = nn.Parameter(torch.randn(hidden_sizes[0]))
    inp = jax.random.normal(keys[0], (1, hidden_sizes[0]), dtype=jnp.float32)
    weights, biases = [], []
    for i in range(len(sizes) - 1):
        fan_in, fan_out = sizes[i], sizes[i + 1]
        bound = 1.0 / math.sqrt(fan_in)          # nn.Linear default init range
        w = jax.random.uniform(keys[1 + 2 * i], (fan_in, fan_out),
                               minval=-bound, maxval=bound, dtype=jnp.float32)
        b = jax.random.uniform(keys[2 + 2 * i], (1, fan_out),
                               minval=-bound, maxval=bound, dtype=jnp.float32)
        weights.append(w)
        biases.append(b)
    # This script hardcodes the 2-linear-layer MLP (len(hidden_sizes) == 2).
    return (inp, weights[0], biases[0], weights[1], biases[1])


if __name__ == "__main__":
    hidden_sizes = [32, 64]
    output_shape = (4, 16)       # prod = 64
    batch_size = 8

    key = jax.random.PRNGKey(0)
    params = init_params(key, hidden_sizes, output_shape)
    inp, w1, b1, w2, b2 = params
    P = w2.shape[1]

    # Pure-JAX reference for the deterministic part (mu).
    mu = jax.nn.relu(jax.nn.relu(inp @ w1 + b1) @ w2 + b2)           # (1, P)
    mu_full = jnp.broadcast_to(mu, (batch_size, P)).reshape(
        (batch_size,) + output_shape)

    # use_mean=True path: must equal mu exactly (no noise added).
    mean_out = generative_mlp_forward(params, batch_size, output_shape,
                                      use_mean=True)
    jax.block_until_ready(mean_out)
    assert mean_out.shape == (batch_size,) + output_shape
    assert mean_out.dtype == jnp.float32
    assert jnp.allclose(mean_out, mu_full, atol=1e-5, rtol=1e-5)

    # Sampling path: mu + exp(0.4) * eps.
    noise_key = jax.random.PRNGKey(1234)
    samples = generative_mlp_forward(params, batch_size, output_shape,
                                     key=noise_key, use_mean=False)
    jax.block_until_ready(samples)
    assert samples.shape == (batch_size,) + output_shape
    assert samples.dtype == jnp.float32
    assert bool(jnp.all(jnp.isfinite(samples)))

    # Exact reference: regenerate the same eps stream and check the FMA.
    rows = batch_size * P // 128
    eps_ref = _draw_eps(noise_key, rows).astype(jnp.float32)
    expected = mu_full + _SCALE * eps_ref.reshape((batch_size,) + output_shape)
    assert jnp.allclose(samples, expected, atol=1e-5, rtol=1e-5)

    # Loose sanity on the N(0,1) draw (512 samples).
    z = (samples - mu_full) / _SCALE
    assert abs(float(jnp.mean(z))) < 0.5
    assert 0.5 < float(jnp.std(z)) < 2.0

    print("KERNEL_OK")
</pallas_src>

<mosaic_0001>
module attributes {stable_mosaic.version = 11 : i64} {
  func.func @_mu_kernel(%arg0: memref<1x32xf32, #tpu.memory_space<vmem>>, %arg1: memref<32x64xf32, #tpu.memory_space<vmem>>, %arg2: memref<1x64xf32, #tpu.memory_space<vmem>>, %arg3: memref<64x64xf32, #tpu.memory_space<vmem>>, %arg4: memref<1x64xf32, #tpu.memory_space<vmem>>, %arg5: memref<1x128xf32, #tpu.memory_space<vmem>>) attributes {dimension_semantics = [], scalar_prefetch = 0 : i64, scratch_operands = 0 : i64, tpu.core_type = #tpu.core_type<tc>} {
    %c0 = arith.constant 0 : index
    %c0_0 = arith.constant 0 : index
    %0 = vector.load %arg0[%c0, %c0_0] : memref<1x32xf32, #tpu.memory_space<vmem>>, vector<1x32xf32>
    %c0_1 = arith.constant 0 : index
    %c0_2 = arith.constant 0 : index
    %1 = vector.load %arg1[%c0_1, %c0_2] : memref<32x64xf32, #tpu.memory_space<vmem>>, vector<32x64xf32>
    %cst = arith.constant dense<0.000000e+00> : vector<1x64xf32>
    %2 = tpu.matmul %0, %1, %cst {dimension_numbers = #tpu.dot_dimension_numbers<[1], [0], [0], [1], [0, 0, 1, 1], [], []>} : vector<1x32xf32>, vector<32x64xf32>, vector<1x64xf32> -> vector<1x64xf32>
    %c0_3 = arith.constant 0 : index
    %c0_4 = arith.constant 0 : index
    %3 = vector.load %arg2[%c0_3, %c0_4] : memref<1x64xf32, #tpu.memory_space<vmem>>, vector<1x64xf32>
    %4 = arith.addf %2, %3 : vector<1x64xf32>
    %cst_5 = arith.constant 0.000000e+00 : f32
    %5 = vector.broadcast %cst_5 : f32 to vector<1x64xf32>
    %6 = arith.maximumf %4, %5 : vector<1x64xf32>
    %c0_6 = arith.constant 0 : index
    %c0_7 = arith.constant 0 : index
    %7 = vector.load %arg3[%c0_6, %c0_7] : memref<64x64xf32, #tpu.memory_space<vmem>>, vector<64x64xf32>
    %cst_8 = arith.constant dense<0.000000e+00> : vector<1x64xf32>
    %8 = tpu.matmul %6, %7, %cst_8 {dimension_numbers = #tpu.dot_dimension_numbers<[1], [0], [0], [1], [0, 0, 1, 1], [], []>} : vector<1x64xf32>, vector<64x64xf32>, vector<1x64xf32> -> vector<1x64xf32>
    %c0_9 = arith.constant 0 : index
    %c0_10 = arith.constant 0 : index
    %9 = vector.load %arg4[%c0_9, %c0_10] : memref<1x64xf32, #tpu.memory_space<vmem>>, vector<1x64xf32>
    %10 = arith.addf %8, %9 : vector<1x64xf32>
    %cst_11 = arith.constant 0.000000e+00 : f32
    %11 = vector.broadcast %cst_11 : f32 to vector<1x64xf32>
    %12 = arith.maximumf %10, %11 : vector<1x64xf32>
    %13 = tpu.concatenate %12, %12 in 1 : vector<1x64xf32>, vector<1x64xf32> -> vector<1x128xf32>
    %c0_12 = arith.constant 0 : index
    %c0_13 = arith.constant 0 : index
    %14 = vector.load %arg5[%c0_12, %c0_13] : memref<1x128xf32, #tpu.memory_space<vmem>>, vector<1x128xf32>
    tpu.vector_store %arg5[%c0_12, %c0_13], %13 {strides = array<i32>} : memref<1x128xf32, #tpu.memory_space<vmem>>, vector<1x128xf32>,
    return
  }
}

</mosaic_0001>

<llo_original>
// kernel: tpu_custom_call.1
$region0: #{tpu_custom_call.1}
  #allocation0 [shape = 'u32[]', space=smem, size = 0x4, offset = 0x4, fixed_abs, tag = 'smem constant byte address 0x4 - core index']
  #allocation1 [shape = 'u32[144,128]{1,0:T(1,128)}', space=vmem, size = 0x12000, scoped, tag = 'internal scratch']
  %s0 = inlined_call_operand.hbm [shape: f32[1,32], index: 0, kind: input, shape index: {}]
  %s1 = inlined_call_operand.hbm [shape: f32[32,64], index: 1, kind: input, shape index: {}]
  %s2 = inlined_call_operand.vmem [shape: f32[1,64], index: 2, kind: input, shape index: {}]
  %s3 = inlined_call_operand.hbm [shape: f32[64,64], index: 3, kind: input, shape index: {}]
  %s4 = inlined_call_operand.vmem [shape: f32[1,64], index: 4, kind: input, shape index: {}]
  %s5 = inlined_call_operand.hbm [shape: f32[1,128], index: 5, kind: output, shape index: {}]
  %s6 = sld [smem:[#allocation0]]
  $region42: #{tpu_custom_call.1} parent=0
    _
  %s8 = ssub.s32 1, %s6
  %s9 = scalar_select 0, %s8, %s6
  $region1: #{tpu_custom_call.1} parent=0
    #allocation2 [shape = 'u8[512]{0}', space=vmem, size = 0x400, scoped, tag = 'input window, operand 0, single buffered']
    #allocation3 [shape = 's32[1]{0}', space=sflag, size = 0x4, scoped, tag = 'scoped memory for tpu_custom_call.1']
    #allocation4 [shape = 's32[1]{0}', space=sflag, size = 0x4, scoped, tag = 'scoped memory for tpu_custom_call.1']
    #allocation5 [shape = 'u8[16384]{0}', space=vmem, size = 0x4000, scoped, tag = 'input window, operand 1, single buffered']
    #allocation6 [shape = 's32[1]{0}', space=sflag, size = 0x4, scoped, tag = 'scoped memory for tpu_custom_call.1']
    #allocation7 [shape = 'u8[32768]{0}', space=vmem, size = 0x8000, scoped, tag = 'input window, operand 3, single buffered']
    #allocation8 [shape = 'u8[512]{0}', space=vmem, size = 0x400, scoped, tag = 'output window, operand 0, single buffered']
    %10 = vsyncpa [#allocation3], 0
    %11 = vsyncpa [#allocation6], 0
    %12 = vsyncpa [#allocation4], 0
    // Predicated region
    $region2: #{tpu_custom_call.1} parent=1 // pred_check
      _
    $region3: #{tpu_custom_call.1} parent=1 // pred_check_branch
      %14 = sbr.rel (0) target = $region5
    $region4: #{tpu_custom_call.1} parent=1 // pred_region
      %s16 = ssub.s32 16, 16
      %17 = vsyncadd [#allocation3], %s16
      %s19 = sshll.u32 [#allocation2], 4
      %s20 = int_to_ptr.vmem [resolvable:$true] %s19
      %22 = dma.hbm_to_vmem [thread:$0]  %s0, 16, %s20, [#allocation3]
    $region5: #{tpu_custom_call.1} parent=1 // pred_fallthru
      _
    // Predicated region
    $region6: #{tpu_custom_call.1} parent=1 // pred_check
      _
    $region7: #{tpu_custom_call.1} parent=1 // pred_check_branch
      %24 = sbr.rel (0) target = $region9
    $region8: #{tpu_custom_call.1} parent=1 // pred_region
      %s26 = ssub.s32 512, 512
      %27 = vsyncadd [#allocation6], %s26
      %s28 = sshll.u32 [#allocation5], 4
      %s29 = int_to_ptr.vmem [resolvable:$true] %s28
      %34 = dma.hbm_to_vmem [thread:$0]  %s1, 512, %s29, [#allocation6], 128, 128, 8
    $region9: #{tpu_custom_call.1} parent=1 // pred_fallthru
      _
    // Predicated region
    $region10: #{tpu_custom_call.1} parent=1 // pred_check
      _
    $region11: #{tpu_custom_call.1} parent=1 // pred_check_branch
      %36 = sbr.rel (0) target = $region13
    $region12: #{tpu_custom_call.1} parent=1 // pred_region
      _
    $region13: #{tpu_custom_call.1} parent=1 // pred_fallthru
      _
    // Predicated region
    $region14: #{tpu_custom_call.1} parent=1 // pred_check
      _
    $region15: #{tpu_custom_call.1} parent=1 // pred_check_branch
      %38 = sbr.rel (0) target = $region17
    $region16: #{tpu_custom_call.1} parent=1 // pred_region
      %s40 = ssub.s32 1024, 1024
      %41 = vsyncadd [#allocation6], %s40
      %s42 = sshll.u32 [#allocation7], 4
      %s43 = int_to_ptr.vmem [resolvable:$true] %s42
      %48 = dma.hbm_to_vmem [thread:$0]  %s3, 1024, %s43, [#allocation6], 128, 128, 8
    $region17: #{tpu_custom_call.1} parent=1 // pred_fallthru
      _
    // Predicated region
    $region18: #{tpu_custom_call.1} parent=1 // pred_check
      _
    $region19: #{tpu_custom_call.1} parent=1 // pred_check_branch
      %50 = sbr.rel (0) target = $region21
    $region20: #{tpu_custom_call.1} parent=1 // pred_region
      _
    $region21: #{tpu_custom_call.1} parent=1 // pred_fallthru
      _
    // Predicated region
    $region22: #{tpu_custom_call.1} parent=1 // pred_check
      _
    $region23: #{tpu_custom_call.1} parent=1 // pred_check_branch
      %52 = sbr.rel (0) target = $region25
    $region24: #{tpu_custom_call.1} parent=1 // pred_region
      %53 = dma.done [#allocation3], 16
    $region25: #{tpu_custom_call.1} parent=1 // pred_fallthru
      _
    // Predicated region
    $region26: #{tpu_custom_call.1} parent=1 // pred_check
      _
    $region27: #{tpu_custom_call.1} parent=1 // pred_check_branch
      %55 = sbr.rel (0) target = $region29
    $region28: #{tpu_custom_call.1} parent=1 // pred_region
      %56 = dma.done [#allocation6], 512
    $region29: #{tpu_custom_call.1} parent=1 // pred_fallthru
      _
    // Predicated region
    $region30: #{tpu_custom_call.1} parent=1 // pred_check
      _
    $region31: #{tpu_custom_call.1} parent=1 // pred_check_branch
      %58 = sbr.rel (0) target = $region33
    $region32: #{tpu_custom_call.1} parent=1 // pred_region
      %59 = dma.done [#allocation6], 1024
    $region33: #{tpu_custom_call.1} parent=1 // pred_fallthru
      _
    %v60 = vld [vmem:[#allocation2] sm:$0x1]
    %v61 = vld [vmem:[#allocation5] sm:$0xff]
    %v62 = vld [vmem:[#allocation5 + $0x8] sm:$0xff]
    %v63 = vld [vmem:[#allocation5 + $0x10] sm:$0xff]
    %v64 = vld [vmem:[#allocation5 + $0x18] sm:$0xff]
    %v65 = vld [vmem:[%s2] sm:$0x1]
    %vm66 = vcmask 261120
    %v68 = vsel %vm66, %v60, 0
    %70 = vmatprep.subr.mxu0 0.0
    %71 = vmatpush1.msra.mxu0 %v61
    %72 = vmatprep.subr.mxu0 0.0
    %73 = vmatpush1.msra.mxu0 %v62
    %74 = vmatprep.subr.mxu0 0.0
    %75 = vmatpush1.msra.mxu0 %v63
    %76 = vmatprep.subr.mxu0 0.0
    %77 = vmatpush1.msra.mxu0 %v64
    %78 = vmatprep.subr.mxu0 0.0
    %79 = vmatpush1.msra.mxu0 0.0
    %80 = vmatprep.subr.mxu0 0.0
    %81 = vmatpush1.msra.mxu0 0.0
    %82 = vmatprep.subr.mxu0 0.0
    %83 = vmatpush1.msra.mxu0 0.0
    %84 = vmatprep.subr.mxu0 0.0
    %85 = vmatpush1.msra.mxu0 0.0
    %86 = vmatprep.subr.mxu0 0.0
    %87 = vmatpush1.msra.mxu0 0.0
    %88 = vmatprep.subr.mxu0 0.0
    %89 = vmatpush1.msra.mxu0 0.0
    %90 = vmatprep.subr.mxu0 0.0
    %91 = vmatpush1.msra.mxu0 0.0
    %92 = vmatprep.subr.mxu0 0.0
    %93 = vmatpush1.msra.mxu0 0.0
    %94 = vmatprep.subr.mxu0 0.0
    %95 = vmatpush1.msra.mxu0 0.0
    %96 = vmatprep.subr.mxu0 0.0
    %97 = vmatpush1.msra.mxu0 0.0
    %98 = vmatprep.subr.mxu0 0.0
    %99 = vmatpush1.msra.mxu0 0.0
    %100 = vmatprep.subr.mxu0 0.0
    %101 = vmatpush1.msra.mxu0 0.0
    %102 = vmatprep.subr.mxu0 0.0
    %103 = vmatpush1.msra.mxu0 0.0
    %104 = vmatprep.subr.mxu0 0.0
    %105 = vmatpush1.msra.mxu0 0.0
    %106 = vmatprep.subr.mxu0 0.0
    %107 = vmatpush1.msra.mxu0 0.0
    %108 = vmatprep.subr.mxu0 0.0
    %109 = vmatpush1.msra.mxu0 0.0
    %110 = vmatprep.subr.mxu0 0.0
    %111 = vmatpush1.msra.mxu0 0.0
    %112 = vmatprep.subr.mxu0 0.0
    %113 = vmatpush1.msra.mxu0 0.0
    %114 = vmatprep.subr.mxu0 0.0
    %115 = vmatpush1.msra.mxu0 0.0
    %116 = vmatprep.subr.mxu0 0.0
    %117 = vmatpush1.msra.mxu0 0.0
    %118 = vmatprep.subr.mxu0 0.0
    %119 = vmatpush1.msra.mxu0 0.0
    %120 = vmatprep.subr.mxu0 0.0
    %121 = vmatpush1.msra.mxu0 0.0
    %122 = vmatprep.subr.mxu0 0.0
    %123 = vmatpush1.msra.mxu0 0.0
    %124 = vmatprep.subr.mxu0 0.0
    %125 = vmatpush1.msra.mxu0 0.0
    %126 = vmatprep.subr.mxu0 0.0
    %127 = vmatpush1.msra.mxu0 0.0
    %128 = vmatprep.subr.mxu0 0.0
    %129 = vmatpush1.msra.mxu0 0.0
    %130 = vmatprep.subr.mxu0 0.0
    %131 = vmatpush1.msra.mxu0 0.0
    %132 = vmatprep.subr.mxu0 0.0
    %133 = vmatpush1.msra.mxu0 0.0
    %134 = vmatprep.mubr.f32.mxu0 0.0
    %135 = vmatmul.mubr.f32.gmra.mrb[0].mxu0 %v68
    %v136 = vpop.f32.mrb[0].mxu0
    %v137 = vadd.f32 %v65, %v136
    %v138 = vpop.f32.mrb[0].mxu0
    %139 = vdwg.mxu0
    %v140 = vmax.f32 %v137, 0.0
    %v141 = vld [vmem:[#allocation7] sm:$0xff]
    %v142 = vld [vmem:[#allocation7 + $0x8] sm:$0xff]
    %v143 = vld [vmem:[#allocation7 + $0x10] sm:$0xff]
    %v144 = vld [vmem:[#allocation7 + $0x18] sm:$0xff]
    %v145 = vld [vmem:[#allocation7 + $0x20] sm:$0xff]
    %v146 = vld [vmem:[#allocation7 + $0x28] sm:$0xff]
    %v147 = vld [vmem:[#allocation7 + $0x30] sm:$0xff]
    %v148 = vld [vmem:[#allocation7 + $0x38] sm:$0xff]
    %v149 = vld [vmem:[%s4] sm:$0x1]
    %vm150 = vcmask 523264
    %v152 = vsel %vm150, %v140, 0
    %154 = vmatprep.subr.mxu0 0.0
    %155 = vmatpush1.msra.mxu0 %v141
    %156 = vmatprep.subr.mxu0 0.0
    %157 = vmatpush1.msra.mxu0 %v142
    %158 = vmatprep.subr.mxu0 0.0
    %159 = vmatpush1.msra.mxu0 %v143
    %160 = vmatprep.subr.mxu0 0.0
    %161 = vmatpush1.msra.mxu0 %v144
    %162 = vmatprep.subr.mxu0 0.0
    %163 = vmatpush1.msra.mxu0 %v145
    %164 = vmatprep.subr.mxu0 0.0
    %165 = vmatpush1.msra.mxu0 %v146
    %166 = vmatprep.subr.mxu0 0.0
    %167 = vmatpush1.msra.mxu0 %v147
    %168 = vmatprep.subr.mxu0 0.0
    %169 = vmatpush1.msra.mxu0 %v148
    %170 = vmatprep.subr.mxu0 0.0
    %171 = vmatpush1.msra.mxu0 0.0
    %172 = vmatprep.subr.mxu0 0.0
    %173 = vmatpush1.msra.mxu0 0.0
    %174 = vmatprep.subr.mxu0 0.0
    %175 = vmatpush1.msra.mxu0 0.0
    %176 = vmatprep.subr.mxu0 0.0
    %177 = vmatpush1.msra.mxu0 0.0
    %178 = vmatprep.subr.mxu0 0.0
    %179 = vmatpush1.msra.mxu0 0.0
    %180 = vmatprep.subr.mxu0 0.0
    %181 = vmatpush1.msra.mxu0 0.0
    %182 = vmatprep.subr.mxu0 0.0
    %183 = vmatpush1.msra.mxu0 0.0
    %184 = vmatprep.subr.mxu0 0.0
    %185 = vmatpush1.msra.mxu0 0.0
    %186 = vmatprep.subr.mxu0 0.0
    %187 = vmatpush1.msra.mxu0 0.0
    %188 = vmatprep.subr.mxu0 0.0
    %189 = vmatpush1.msra.mxu0 0.0
    %190 = vmatprep.subr.mxu0 0.0
    %191 = vmatpush1.msra.mxu0 0.0
    %192 = vmatprep.subr.mxu0 0.0
    %193 = vmatpush1.msra.mxu0 0.0
    %194 = vmatprep.subr.mxu0 0.0
    %195 = vmatpush1.msra.mxu0 0.0
    %196 = vmatprep.subr.mxu0 0.0
    %197 = vmatpush1.msra.mxu0 0.0
    %198 = vmatprep.subr.mxu0 0.0
    %199 = vmatpush1.msra.mxu0 0.0
    %200 = vmatprep.subr.mxu0 0.0
    %201 = vmatpush1.msra.mxu0 0.0
    %202 = vmatprep.subr.mxu0 0.0
    %203 = vmatpush1.msra.mxu0 0.0
    %204 = vmatprep.subr.mxu0 0.0
    %205 = vmatpush1.msra.mxu0 0.0
    %206 = vmatprep.subr.mxu0 0.0
    %207 = vmatpush1.msra.mxu0 0.0
    %208 = vmatprep.subr.mxu0 0.0
    %209 = vmatpush1.msra.mxu0 0.0
    %210 = vmatprep.subr.mxu0 0.0
    %211 = vmatpush1.msra.mxu0 0.0
    %212 = vmatprep.subr.mxu0 0.0
    %213 = vmatpush1.msra.mxu0 0.0
    %214 = vmatprep.subr.mxu0 0.0
    %215 = vmatpush1.msra.mxu0 0.0
    %216 = vmatprep.subr.mxu0 0.0
    %217 = vmatpush1.msra.mxu0 0.0
    %218 = vmatprep.mubr.f32.mxu0 0.0
    %219 = vmatmul.mubr.f32.gmra.mrb[0].mxu0 %v152
    %v220 = vpop.f32.mrb[0].mxu0
    %v221 = vadd.f32 %v149, %v220
    %v222 = vpop.f32.mrb[0].mxu0
    %223 = vdwg.mxu0
    %v224 = vmax.f32 %v221, 0.0
    %226 = vrot.lane.b32.xlu0 %v224, 64
    %v227 = vpop.permute.xlu0 %226
    %v229 = vsel %vm150, %v224, %v227
    %230 = vst [vmem:[#allocation8] sm:$0x1] %v229
    // Predicated region
    $region34: #{tpu_custom_call.1} parent=1 // pred_check
      _
    $region35: #{tpu_custom_call.1} parent=1 // pred_check_branch
      %232 = sbr.rel (0) target = $region37
    $region36: #{tpu_custom_call.1} parent=1 // pred_region
      %s234 = ssub.s32 16, 16
      %235 = vsyncadd [#allocation4], %s234
      %s237 = sshll.u32 [#allocation8], 4
      %s238 = int_to_ptr.vmem [resolvable:$true] %s237
      %240 = dma.vmem_to_hbm [thread:$0]  %s238, 16, %s5, [#allocation4]
    $region37: #{tpu_custom_call.1} parent=1 // pred_fallthru
      _
    // Predicated region
    $region38: #{tpu_custom_call.1} parent=1 // pred_check
      _
    $region39: #{tpu_custom_call.1} parent=1 // pred_check_branch
      %242 = sbr.rel (0) target = $region41
    $region40: #{tpu_custom_call.1} parent=1 // pred_region
      %243 = dma.done [#allocation4], 16
    $region41: #{tpu_custom_call.1} parent=1 // pred_fallthru
      _
    %244 = vsyncpa [#allocation3], 1
    %245 = vsyncpa [#allocation6], 1
    %246 = vsyncpa [#allocation4], 1

</llo_original>
